<compile_context>
chip_gen: v7x
topology: tpu7x:2x2x1
jax: 0.10.0
libtpu: 0.0.40
codegen_flags: <defaults>
</compile_context>

<pallas_src>
import functools

import jax
import jax.numpy as jnp
from jax import lax
from jax.experimental import pallas as pl
from jax.experimental.pallas import tpu as pltpu


def _round_up(x, m):
    return ((x + m - 1) // m) * m


def _largest_divisor_le(n, cap):
    cap = max(1, min(n, cap))
    for d in range(cap, 0, -1):
        if n % d == 0:
            return d
    return 1


def _vmem_capacity_bytes():
    try:
        return int(pltpu.get_tpu_info().vmem_capacity_bytes)
    except Exception:
        return 64 * 1024 * 1024  # conservative fallback (v7x-class)


def _plan_tiling(T, B, N, i_itemsize, spike_itemsize):
    """Choose (Np, NB, TB, Bp, Tt, vmem_budget) per TPU generation."""
    vmem_cap = _vmem_capacity_bytes()
    # Headroom for compiler scratch: ~40 MiB usable on v7x (64 MiB physical),
    # ~96 MiB on v5e/v6e (128 MiB physical).
    budget = max(16 * 1024 * 1024,
                 min(vmem_cap - 24 * 1024 * 1024, 96 * 1024 * 1024))
    small_vmem = vmem_cap < 100 * 1024 * 1024  # v7x-class: 64 MiB VMEM, 2 TCs

    # Row-tile multiple keeps every stream's packed sublane layout unmasked
    # (f32 -> 8 rows, bf16 -> 16, int8 -> 32).
    row_mult = max(8, 32 // i_itemsize, 32 // spike_itemsize)

    # Lane-dense last dim; block the lane axis for very wide layers so the
    # per-tile footprint stays bounded regardless of N.
    Np = _round_up(N, 128)
    if Np <= 2048:
        NB = Np
    else:
        NB = 128 * _largest_divisor_le(Np // 128, 2048 // 128)

    # Per-timestep f32 row-block target: big tiles on v5e/v6e amortize the
    # per-grid-step overhead; on v7x keep ~2 MiB blocks and rely on the Tt
    # time-blocking below instead (8 MiB x many buffers would not fit 64 MiB).
    blk_target = (2 if small_vmem else 8) * 1024 * 1024
    TB = max(row_mult, (blk_target // (NB * 4)) // row_mult * row_mult)
    bp0 = _round_up(B, row_mult)
    TB = min(TB, bp0)
    if small_vmem and bp0 >= 2 * row_mult:
        # Ensure grid_r >= 2 so both v7x TensorCores stream concurrently.
        TB = min(TB, _round_up(bp0 // 2, row_mult))

    # Time-blocking: Tt timesteps per grid point (Tt divides T, <= 8).
    Tt = _largest_divisor_le(T, 8)

    def footprint(tb, tt):
        return (2 * tt * tb * NB * i_itemsize        # i, double-buffered
                + 2 * tt * tb * NB * spike_itemsize  # spikes, double-buffered
                + 4 * tb * NB * 4)                   # v0 + resident V (f32)

    while Tt > 1 and footprint(TB, Tt) > budget:
        Tt = _largest_divisor_le(T, Tt - 1)
    while TB > row_mult and footprint(TB, Tt) > budget:
        TB = max(row_mult, (TB // 2) // row_mult * row_mult)

    Bp = _round_up(B, TB)
    return Np, NB, TB, Bp, Tt, budget


def _lif_kernel(i_ref, v0_ref, spikes_ref, v_out_ref, *, scale, v_rest,
                v_reset, v_th, tt):
    """One (row-tile, lane-tile, time-block) grid point.

    v_out_ref's block index depends only on (r, n), so its VMEM block stays
    resident across the whole (inner) time axis and carries the membrane
    state; it is written back to HBM once per (row, lane) tile.
    """
    t_blk = pl.program_id(2)

    @pl.when(t_blk == 0)
    def _():
        v_out_ref[...] = v0_ref[...]

    def step(s, v):
        i_ext = i_ref[s].astype(jnp.float32)             # (TB, NB)
        # dV = (-(V - v_rest) + I) * (dt / tau_mem); same op order as the
        # PyTorch reference (kernel is mem-bound, FLOP count is irrelevant).
        v_new = v + (-(v - v_rest) + i_ext) * scale
        fired = v_new >= v_th
        spikes_ref[s] = fired.astype(spikes_ref.dtype)   # 0/1: exact in any dtype
        return jnp.where(fired, v_reset, v_new)

    v_out_ref[...] = lax.fori_loop(0, tt, step, v_out_ref[...], unroll=True)


@functools.partial(
    jax.jit,
    static_argnames=("dt", "tau_mem", "v_rest", "v_reset", "v_th",
                     "spike_dtype"))
def lif_run(i_ext_seq, v0, *, dt=0.001, tau_mem=0.02, v_rest=-65.0,
            v_reset=-65.0, v_th=-50.0, spike_dtype=jnp.float32):
    """Run T fused LIF steps.

    i_ext_seq: [T, B, N] input currents (f32 or bf16; cast to f32 in-kernel).
    v0:        [B, N]    initial membrane potentials.
    Returns (spikes [T, B, N] of spike_dtype, V_final [B, N] float32).
    """
    T, B, N = i_ext_seq.shape
    scale = float(dt) / float(tau_mem)
    v_rest = float(v_rest)
    v_reset = float(v_reset)
    v_th = float(v_th)

    spike_dtype = jnp.dtype(spike_dtype)
    i_itemsize = jnp.dtype(i_ext_seq.dtype).itemsize
    Np, NB, TB, Bp, Tt, vmem_budget = _plan_tiling(
        T, B, N, i_itemsize, spike_dtype.itemsize)
    grid = (Bp // TB, Np // NB, T // Tt)

    v0 = v0.astype(jnp.float32)
    # Pad only when needed: padding the full arrays of a mem-bound op roughly
    # doubles its HBM traffic, so the aligned case must stay copy-free.
    padded = (Bp, Np) != (B, N)
    if padded:
        i_in = jnp.pad(i_ext_seq, ((0, 0), (0, Bp - B), (0, Np - N)))
        v_in = jnp.pad(v0, ((0, Bp - B), (0, Np - N)), constant_values=v_rest)
    else:
        i_in, v_in = i_ext_seq, v0

    kernel = functools.partial(_lif_kernel, scale=scale, v_rest=v_rest,
                               v_reset=v_reset, v_th=v_th, tt=Tt)

    spikes, v_out = pl.pallas_call(
        kernel,
        out_shape=(
            jax.ShapeDtypeStruct((T, Bp, Np), spike_dtype),
            jax.ShapeDtypeStruct((Bp, Np), jnp.float32),
        ),
        grid_spec=pltpu.PrefetchScalarGridSpec(
            num_scalar_prefetch=0,
            grid=grid,
            in_specs=[
                pl.BlockSpec((Tt, TB, NB), lambda r, n, t: (t, r, n)),
                # v0's block index is constant over t, so its DMA is not
                # re-issued across the time loop.  (pl.Buffered(1) would free
                # one small buffer but is skipped for lowering safety.)
                pl.BlockSpec((TB, NB), lambda r, n, t: (r, n)),
            ],
            out_specs=(
                pl.BlockSpec((Tt, TB, NB), lambda r, n, t: (t, r, n)),
                pl.BlockSpec((TB, NB), lambda r, n, t: (r, n)),
            ),
        ),
        # New membrane state reuses the old state's HBM buffer.
        input_output_aliases={1: 1},
        compiler_params=pltpu.CompilerParams(
            # Row/lane axes shard across TensorCores; time stays sequential
            # (required: V is carried across t in the resident output block).
            dimension_semantics=("parallel", "parallel", "arbitrary"),
            vmem_limit_bytes=vmem_budget,
        ),
    )(i_in, v_in)

    if padded:
        spikes = spikes[:, :B, :N]
        v_out = v_out[:B, :N]
    return spikes, v_out


class LIFNeuronPallas:
    """Stateful wrapper mirroring the PyTorch LIFNeuron module."""

    def __init__(self, num_neurons, dt=0.001, tau_mem=0.02, v_rest=-65.0,
                 v_reset=-65.0, v_th=-50.0, spike_dtype=jnp.float32):
        self.num_neurons = num_neurons
        self.dt = dt
        self.tau_mem = tau_mem
        self.v_rest = v_rest
        self.v_reset = v_reset
        self.v_th = v_th
        self.spike_dtype = spike_dtype
        self.V = None

    def _params(self):
        return dict(dt=self.dt, tau_mem=self.tau_mem, v_rest=self.v_rest,
                    v_reset=self.v_reset, v_th=self.v_th,
                    spike_dtype=self.spike_dtype)

    def _ensure_state(self, B, N):
        if self.V is None or self.V.shape != (B, N):
            self.V = jnp.full((B, N), self.v_rest, dtype=jnp.float32)

    def __call__(self, i_ext):
        """Single step (matches LIFNeuron.forward): [B, N] -> spikes [B, N].

        For real workloads prefer run_steps: at T=1 host dispatch dominates.
        """
        B, N = i_ext.shape
        self._ensure_state(B, N)
        spikes, v_new = lif_run(jnp.asarray(i_ext)[None], self.V,
                                **self._params())
        self.V = v_new
        return spikes[0]

    def run_steps(self, i_ext_seq):
        """Fused T-step simulation: [T, B, N] -> spikes [T, B, N]."""
        T, B, N = i_ext_seq.shape
        self._ensure_state(B, N)
        spikes, v_new = lif_run(jnp.asarray(i_ext_seq), self.V,
                                **self._params())
        self.V = v_new
        return spikes


if __name__ == "__main__":
    dt, tau_mem, v_rest, v_reset, v_th = 0.001, 0.02, -65.0, -65.0, -50.0

    def reference(i_seq, v0):
        v = v0
        outs = []
        for t in range(i_seq.shape[0]):
            dv = (-(v - v_rest) + i_seq[t]) * (dt / tau_mem)
            v = v + dv
            s = (v >= v_th).astype(jnp.float32)
            v = jnp.where(s > 0, jnp.full_like(v, v_reset), v)
            outs.append(s)
        return jnp.stack(outs), v

    key = jax.random.PRNGKey(0)

    # --- small, unaligned shapes (exercises the padded path) ---
    T, B, N = 8, 2, 32
    i_seq = jax.random.uniform(key, (T, B, N), dtype=jnp.float32,
                               minval=0.0, maxval=600.0)
    v0 = jnp.full((B, N), v_rest, dtype=jnp.float32)
    ref_s, ref_v = reference(i_seq, v0)

    neuron = LIFNeuronPallas(N, dt=dt, tau_mem=tau_mem, v_rest=v_rest,
                             v_reset=v_reset, v_th=v_th)
    spikes = jax.block_until_ready(neuron.run_steps(i_seq))
    assert spikes.shape == (T, B, N)
    assert jnp.array_equal(spikes, ref_s), "spike mismatch (fused, f32)"
    assert jnp.allclose(neuron.V, ref_v, atol=1e-4), "V mismatch (fused, f32)"

    # --- int8 spike stream (compute stays f32; 0/1 spikes are exact) ---
    neuron_i8 = LIFNeuronPallas(N, dt=dt, tau_mem=tau_mem, v_rest=v_rest,
                                v_reset=v_reset, v_th=v_th,
                                spike_dtype=jnp.int8)
    spikes_i8 = jax.block_until_ready(neuron_i8.run_steps(i_seq))
    assert spikes_i8.dtype == jnp.int8
    assert jnp.array_equal(spikes_i8.astype(jnp.float32), ref_s), \
        "spike mismatch (fused, int8)"
    assert jnp.allclose(neuron_i8.V, ref_v, atol=1e-4), "V mismatch (int8)"

    # --- aligned shapes (exercises the copy-free, time-blocked path) ---
    T2, B2, N2 = 8, 64, 256
    i_seq2 = jax.random.uniform(jax.random.PRNGKey(0), (T2, B2, N2),
                                dtype=jnp.float32, minval=0.0, maxval=600.0)
    v02 = jnp.full((B2, N2), v_rest, dtype=jnp.float32)
    ref_s2, ref_v2 = reference(i_seq2, v02)
    s2, v2 = lif_run(i_seq2, v02, dt=dt, tau_mem=tau_mem, v_rest=v_rest,
                     v_reset=v_reset, v_th=v_th, spike_dtype=jnp.int8)
    jax.block_until_ready((s2, v2))
    assert jnp.array_equal(s2.astype(jnp.float32), ref_s2), \
        "spike mismatch (aligned)"
    assert jnp.allclose(v2, ref_v2, atol=1e-4), "V mismatch (aligned)"

    # --- per-step path (matches module.forward called once per step) ---
    neuron2 = LIFNeuronPallas(N, dt=dt, tau_mem=tau_mem, v_rest=v_rest,
                              v_reset=v_reset, v_th=v_th)
    for t in range(T):
        s_t = neuron2(i_seq[t])
        assert jnp.array_equal(s_t, ref_s[t]), f"spike mismatch at step {t}"
    assert jnp.allclose(neuron2.V, ref_v, atol=1e-4), "V mismatch (stepwise)"

    print("KERNEL_OK")
</pallas_src>

<mosaic_0001>
module attributes {stable_mosaic.version = 11 : i64} {
  func.func @_lif_kernel(%arg0: i32, %arg1: i32, %arg2: i32, %arg3: memref<8x8x128xf32, #tpu.memory_space<vmem>>, %arg4: memref<8x128xf32, #tpu.memory_space<vmem>>, %arg5: memref<8x8x128xf32, #tpu.memory_space<vmem>>, %arg6: memref<8x128xf32, #tpu.memory_space<vmem>>) attributes {dimension_semantics = [#tpu.dimension_semantics<parallel>, #tpu.dimension_semantics<parallel>, #tpu.dimension_semantics<arbitrary>], iteration_bounds = array<i64: 1, 1, 1>, scalar_prefetch = 0 : i64, scratch_operands = 0 : i64, tpu.core_type = #tpu.core_type<tc>, window_params = [{transform_indices = @transform_0, window_bounds = array<i64: 8, 8, 128>}, {transform_indices = @transform_1, window_bounds = array<i64: 8, 128>}, {transform_indices = @transform_2, window_bounds = array<i64: 8, 8, 128>}, {transform_indices = @transform_3, window_bounds = array<i64: 8, 128>}]} {
    %c0_i32 = arith.constant 0 : i32
    %0 = arith.cmpi eq, %arg2, %c0_i32 : i32
    %1 = arith.extui %0 : i1 to i32
    %c0_i32_0 = arith.constant 0 : i32
    %2 = arith.cmpi ne, %1, %c0_i32_0 : i32
    scf.if %2 {
      %c0_76 = arith.constant 0 : index
      %c0_77 = arith.constant 0 : index
      %173 = vector.load %arg4[%c0_76, %c0_77] : memref<8x128xf32, #tpu.memory_space<vmem>>, vector<8x128xf32>
      %c0_78 = arith.constant 0 : index
      %c0_79 = arith.constant 0 : index
      %174 = vector.load %arg6[%c0_78, %c0_79] : memref<8x128xf32, #tpu.memory_space<vmem>>, vector<8x128xf32>
      tpu.vector_store %arg6[%c0_78, %c0_79], %173 {strides = array<i32>} : memref<8x128xf32, #tpu.memory_space<vmem>>, vector<8x128xf32>,
    } else {
    }
    %c0 = arith.constant 0 : index
    %c0_1 = arith.constant 0 : index
    %3 = vector.load %arg6[%c0, %c0_1] : memref<8x128xf32, #tpu.memory_space<vmem>>, vector<8x128xf32>
    %c0_i32_2 = arith.constant 0 : i32
    %4 = arith.index_cast %c0_i32_2 : i32 to index
    %c0_3 = arith.constant 0 : index
    %c0_4 = arith.constant 0 : index
    %5 = vector.load %arg3[%4, %c0_3, %c0_4] : memref<8x8x128xf32, #tpu.memory_space<vmem>>, vector<1x8x128xf32>
    %6 = vector.shape_cast %5 : vector<1x8x128xf32> to vector<8x128xf32>
    %cst = arith.constant -6.500000e+01 : f32
    %7 = vector.broadcast %cst : f32 to vector<8x128xf32>
    %8 = arith.subf %3, %7 : vector<8x128xf32>
    %cst_5 = arith.constant 0.000000e+00 : f32
    %9 = vector.broadcast %cst_5 : f32 to vector<8x128xf32>
    %10 = arith.subf %9, %8 : vector<8x128xf32>
    %11 = arith.addf %10, %6 : vector<8x128xf32>
    %cst_6 = arith.constant 5.000000e-02 : f32
    %12 = vector.broadcast %cst_6 : f32 to vector<8x128xf32>
    %13 = arith.mulf %11, %12 : vector<8x128xf32>
    %14 = arith.addf %3, %13 : vector<8x128xf32>
    %cst_7 = arith.constant -5.000000e+01 : f32
    %15 = vector.broadcast %cst_7 : f32 to vector<8x128xf32>
    %16 = arith.cmpf oge, %14, %15 : vector<8x128xf32>
    %17 = arith.extui %16 : vector<8x128xi1> to vector<8x128xi32>
    %18 = arith.sitofp %17 : vector<8x128xi32> to vector<8x128xf32>
    %19 = arith.index_cast %c0_i32_2 : i32 to index
    %c0_8 = arith.constant 0 : index
    %c0_9 = arith.constant 0 : index
    %20 = vector.load %arg5[%19, %c0_8, %c0_9] : memref<8x8x128xf32, #tpu.memory_space<vmem>>, vector<1x8x128xf32>
    %21 = vector.shape_cast %20 : vector<1x8x128xf32> to vector<8x128xf32>
    %22 = vector.shape_cast %18 : vector<8x128xf32> to vector<1x8x128xf32>
    tpu.vector_store %arg5[%19, %c0_8, %c0_9], %22 {strides = array<i32>} : memref<8x8x128xf32, #tpu.memory_space<vmem>>, vector<1x8x128xf32>,
    %cst_10 = arith.constant -6.500000e+01 : f32
    %23 = vector.broadcast %cst_10 : f32 to vector<8x128xf32>
    %24 = arith.select %16, %23, %14 : vector<8x128xi1>, vector<8x128xf32>
    %c1_i32 = arith.constant 1 : i32
    %25 = arith.index_cast %c1_i32 : i32 to index
    %c0_11 = arith.constant 0 : index
    %c0_12 = arith.constant 0 : index
    %26 = vector.load %arg3[%25, %c0_11, %c0_12] : memref<8x8x128xf32, #tpu.memory_space<vmem>>, vector<1x8x128xf32>
    %27 = vector.shape_cast %26 : vector<1x8x128xf32> to vector<8x128xf32>
    %cst_13 = arith.constant -6.500000e+01 : f32
    %28 = vector.broadcast %cst_13 : f32 to vector<8x128xf32>
    %29 = arith.subf %24, %28 : vector<8x128xf32>
    %cst_14 = arith.constant 0.000000e+00 : f32
    %30 = vector.broadcast %cst_14 : f32 to vector<8x128xf32>
    %31 = arith.subf %30, %29 : vector<8x128xf32>
    %32 = arith.addf %31, %27 : vector<8x128xf32>
    %cst_15 = arith.constant 5.000000e-02 : f32
    %33 = vector.broadcast %cst_15 : f32 to vector<8x128xf32>
    %34 = arith.mulf %32, %33 : vector<8x128xf32>
    %35 = arith.addf %24, %34 : vector<8x128xf32>
    %cst_16 = arith.constant -5.000000e+01 : f32
    %36 = vector.broadcast %cst_16 : f32 to vector<8x128xf32>
    %37 = arith.cmpf oge, %35, %36 : vector<8x128xf32>
    %38 = arith.extui %37 : vector<8x128xi1> to vector<8x128xi32>
    %39 = arith.sitofp %38 : vector<8x128xi32> to vector<8x128xf32>
    %40 = arith.index_cast %c1_i32 : i32 to index
    %c0_17 = arith.constant 0 : index
    %c0_18 = arith.constant 0 : index
    %41 = vector.load %arg5[%40, %c0_17, %c0_18] : memref<8x8x128xf32, #tpu.memory_space<vmem>>, vector<1x8x128xf32>
    %42 = vector.shape_cast %41 : vector<1x8x128xf32> to vector<8x128xf32>
    %43 = vector.shape_cast %39 : vector<8x128xf32> to vector<1x8x128xf32>
    tpu.vector_store %arg5[%40, %c0_17, %c0_18], %43 {strides = array<i32>} : memref<8x8x128xf32, #tpu.memory_space<vmem>>, vector<1x8x128xf32>,
    %cst_19 = arith.constant -6.500000e+01 : f32
    %44 = vector.broadcast %cst_19 : f32 to vector<8x128xf32>
    %45 = arith.select %37, %44, %35 : vector<8x128xi1>, vector<8x128xf32>
    %c2_i32 = arith.constant 2 : i32
    %46 = arith.index_cast %c2_i32 : i32 to index
    %c0_20 = arith.constant 0 : index
    %c0_21 = arith.constant 0 : index
    %47 = vector.load %arg3[%46, %c0_20, %c0_21] : memref<8x8x128xf32, #tpu.memory_space<vmem>>, vector<1x8x128xf32>
    %48 = vector.shape_cast %47 : vector<1x8x128xf32> to vector<8x128xf32>
    %cst_22 = arith.constant -6.500000e+01 : f32
    %49 = vector.broadcast %cst_22 : f32 to vector<8x128xf32>
    %50 = arith.subf %45, %49 : vector<8x128xf32>
    %cst_23 = arith.constant 0.000000e+00 : f32
    %51 = vector.broadcast %cst_23 : f32 to vector<8x128xf32>
    %52 = arith.subf %51, %50 : vector<8x128xf32>
    %53 = arith.addf %52, %48 : vector<8x128xf32>
    %cst_24 = arith.constant 5.000000e-02 : f32
    %54 = vector.broadcast %cst_24 : f32 to vector<8x128xf32>
    %55 = arith.mulf %53, %54 : vector<8x128xf32>
    %56 = arith.addf %45, %55 : vector<8x128xf32>
    %cst_25 = arith.constant -5.000000e+01 : f32
    %57 = vector.broadcast %cst_25 : f32 to vector<8x128xf32>
    %58 = arith.cmpf oge, %56, %57 : vector<8x128xf32>
    %59 = arith.extui %58 : vector<8x128xi1> to vector<8x128xi32>
    %60 = arith.sitofp %59 : vector<8x128xi32> to vector<8x128xf32>
    %61 = arith.index_cast %c2_i32 : i32 to index
    %c0_26 = arith.constant 0 : index
    %c0_27 = arith.constant 0 : index
    %62 = vector.load %arg5[%61, %c0_26, %c0_27] : memref<8x8x128xf32, #tpu.memory_space<vmem>>, vector<1x8x128xf32>
    %63 = vector.shape_cast %62 : vector<1x8x128xf32> to vector<8x128xf32>
    %64 = vector.shape_cast %60 : vector<8x128xf32> to vector<1x8x128xf32>
    tpu.vector_store %arg5[%61, %c0_26, %c0_27], %64 {strides = array<i32>} : memref<8x8x128xf32, #tpu.memory_space<vmem>>, vector<1x8x128xf32>,
    %cst_28 = arith.constant -6.500000e+01 : f32
    %65 = vector.broadcast %cst_28 : f32 to vector<8x128xf32>
    %66 = arith.select %58, %65, %56 : vector<8x128xi1>, vector<8x128xf32>
    %c3_i32 = arith.constant 3 : i32
    %67 = arith.index_cast %c3_i32 : i32 to index
    %c0_29 = arith.constant 0 : index
    %c0_30 = arith.constant 0 : index
    %68 = vector.load %arg3[%67, %c0_29, %c0_30] : memref<8x8x128xf32, #tpu.memory_space<vmem>>, vector<1x8x128xf32>
    %69 = vector.shape_cast %68 : vector<1x8x128xf32> to vector<8x128xf32>
    %cst_31 = arith.constant -6.500000e+01 : f32
    %70 = vector.broadcast %cst_31 : f32 to vector<8x128xf32>
    %71 = arith.subf %66, %70 : vector<8x128xf32>
    %cst_32 = arith.constant 0.000000e+00 : f32
    %72 = vector.broadcast %cst_32 : f32 to vector<8x128xf32>
    %73 = arith.subf %72, %71 : vector<8x128xf32>
    %74 = arith.addf %73, %69 : vector<8x128xf32>
    %cst_33 = arith.constant 5.000000e-02 : f32
    %75 = vector.broadcast %cst_33 : f32 to vector<8x128xf32>
    %76 = arith.mulf %74, %75 : vector<8x128xf32>
    %77 = arith.addf %66, %76 : vector<8x128xf32>
    %cst_34 = arith.constant -5.000000e+01 : f32
    %78 = vector.broadcast %cst_34 : f32 to vector<8x128xf32>
    %79 = arith.cmpf oge, %77, %78 : vector<8x128xf32>
    %80 = arith.extui %79 : vector<8x128xi1> to vector<8x128xi32>
    %81 = arith.sitofp %80 : vector<8x128xi32> to vector<8x128xf32>
    %82 = arith.index_cast %c3_i32 : i32 to index
    %c0_35 = arith.constant 0 : index
    %c0_36 = arith.constant 0 : index
    %83 = vector.load %arg5[%82, %c0_35, %c0_36] : memref<8x8x128xf32, #tpu.memory_space<vmem>>, vector<1x8x128xf32>
    %84 = vector.shape_cast %83 : vector<1x8x128xf32> to vector<8x128xf32>
    %85 = vector.shape_cast %81 : vector<8x128xf32> to vector<1x8x128xf32>
    tpu.vector_store %arg5[%82, %c0_35, %c0_36], %85 {strides = array<i32>} : memref<8x8x128xf32, #tpu.memory_space<vmem>>, vector<1x8x128xf32>,
    %cst_37 = arith.constant -6.500000e+01 : f32
    %86 = vector.broadcast %cst_37 : f32 to vector<8x128xf32>
    %87 = arith.select %79, %86, %77 : vector<8x128xi1>, vector<8x128xf32>
    %c4_i32 = arith.constant 4 : i32
    %88 = arith.index_cast %c4_i32 : i32 to index
    %c0_38 = arith.constant 0 : index
    %c0_39 = arith.constant 0 : index
    %89 = vector.load %arg3[%88, %c0_38, %c0_39] : memref<8x8x128xf32, #tpu.memory_space<vmem>>, vector<1x8x128xf32>
    %90 = vector.shape_cast %89 : vector<1x8x128xf32> to vector<8x128xf32>
    %cst_40 = arith.constant -6.500000e+01 : f32
    %91 = vector.broadcast %cst_40 : f32 to vector<8x128xf32>
    %92 = arith.subf %87, %91 : vector<8x128xf32>
    %cst_41 = arith.constant 0.000000e+00 : f32
    %93 = vector.broadcast %cst_41 : f32 to vector<8x128xf32>
    %94 = arith.subf %93, %92 : vector<8x128xf32>
    %95 = arith.addf %94, %90 : vector<8x128xf32>
    %cst_42 = arith.constant 5.000000e-02 : f32
    %96 = vector.broadcast %cst_42 : f32 to vector<8x128xf32>
    %97 = arith.mulf %95, %96 : vector<8x128xf32>
    %98 = arith.addf %87, %97 : vector<8x128xf32>
    %cst_43 = arith.constant -5.000000e+01 : f32
    %99 = vector.broadcast %cst_43 : f32 to vector<8x128xf32>
    %100 = arith.cmpf oge, %98, %99 : vector<8x128xf32>
    %101 = arith.extui %100 : vector<8x128xi1> to vector<8x128xi32>
    %102 = arith.sitofp %101 : vector<8x128xi32> to vector<8x128xf32>
    %103 = arith.index_cast %c4_i32 : i32 to index
    %c0_44 = arith.constant 0 : index
    %c0_45 = arith.constant 0 : index
    %104 = vector.load %arg5[%103, %c0_44, %c0_45] : memref<8x8x128xf32, #tpu.memory_space<vmem>>, vector<1x8x128xf32>
    %105 = vector.shape_cast %104 : vector<1x8x128xf32> to vector<8x128xf32>
    %106 = vector.shape_cast %102 : vector<8x128xf32> to vector<1x8x128xf32>
    tpu.vector_store %arg5[%103, %c0_44, %c0_45], %106 {strides = array<i32>} : memref<8x8x128xf32, #tpu.memory_space<vmem>>, vector<1x8x128xf32>,
    %cst_46 = arith.constant -6.500000e+01 : f32
    %107 = vector.broadcast %cst_46 : f32 to vector<8x128xf32>
    %108 = arith.select %100, %107, %98 : vector<8x128xi1>, vector<8x128xf32>
    %c5_i32 = arith.constant 5 : i32
    %109 = arith.index_cast %c5_i32 : i32 to index
    %c0_47 = arith.constant 0 : index
    %c0_48 = arith.constant 0 : index
    %110 = vector.load %arg3[%109, %c0_47, %c0_48] : memref<8x8x128xf32, #tpu.memory_space<vmem>>, vector<1x8x128xf32>
    %111 = vector.shape_cast %110 : vector<1x8x128xf32> to vector<8x128xf32>
    %cst_49 = arith.constant -6.500000e+01 : f32
    %112 = vector.broadcast %cst_49 : f32 to vector<8x128xf32>
    %113 = arith.subf %108, %112 : vector<8x128xf32>
    %cst_50 = arith.constant 0.000000e+00 : f32
    %114 = vector.broadcast %cst_50 : f32 to vector<8x128xf32>
    %115 = arith.subf %114, %113 : vector<8x128xf32>
    %116 = arith.addf %115, %111 : vector<8x128xf32>
    %cst_51 = arith.constant 5.000000e-02 : f32
    %117 = vector.broadcast %cst_51 : f32 to vector<8x128xf32>
    %118 = arith.mulf %116, %117 : vector<8x128xf32>
    %119 = arith.addf %108, %118 : vector<8x128xf32>
    %cst_52 = arith.constant -5.000000e+01 : f32
    %120 = vector.broadcast %cst_52 : f32 to vector<8x128xf32>
    %121 = arith.cmpf oge, %119, %120 : vector<8x128xf32>
    %122 = arith.extui %121 : vector<8x128xi1> to vector<8x128xi32>
    %123 = arith.sitofp %122 : vector<8x128xi32> to vector<8x128xf32>
    %124 = arith.index_cast %c5_i32 : i32 to index
    %c0_53 = arith.constant 0 : index
    %c0_54 = arith.constant 0 : index
    %125 = vector.load %arg5[%124, %c0_53, %c0_54] : memref<8x8x128xf32, #tpu.memory_space<vmem>>, vector<1x8x128xf32>
    %126 = vector.shape_cast %125 : vector<1x8x128xf32> to vector<8x128xf32>
    %127 = vector.shape_cast %123 : vector<8x128xf32> to vector<1x8x128xf32>
    tpu.vector_store %arg5[%124, %c0_53, %c0_54], %127 {strides = array<i32>} : memref<8x8x128xf32, #tpu.memory_space<vmem>>, vector<1x8x128xf32>,
    %cst_55 = arith.constant -6.500000e+01 : f32
    %128 = vector.broadcast %cst_55 : f32 to vector<8x128xf32>
    %129 = arith.select %121, %128, %119 : vector<8x128xi1>, vector<8x128xf32>
    %c6_i32 = arith.constant 6 : i32
    %130 = arith.index_cast %c6_i32 : i32 to index
    %c0_56 = arith.constant 0 : index
    %c0_57 = arith.constant 0 : index
    %131 = vector.load %arg3[%130, %c0_56, %c0_57] : memref<8x8x128xf32, #tpu.memory_space<vmem>>, vector<1x8x128xf32>
    %132 = vector.shape_cast %131 : vector<1x8x128xf32> to vector<8x128xf32>
    %cst_58 = arith.constant -6.500000e+01 : f32
    %133 = vector.broadcast %cst_58 : f32 to vector<8x128xf32>
    %134 = arith.subf %129, %133 : vector<8x128xf32>
    %cst_59 = arith.constant 0.000000e+00 : f32
    %135 = vector.broadcast %cst_59 : f32 to vector<8x128xf32>
    %136 = arith.subf %135, %134 : vector<8x128xf32>
    %137 = arith.addf %136, %132 : vector<8x128xf32>
    %cst_60 = arith.constant 5.000000e-02 : f32
    %138 = vector.broadcast %cst_60 : f32 to vector<8x128xf32>
    %139 = arith.mulf %137, %138 : vector<8x128xf32>
    %140 = arith.addf %129, %139 : vector<8x128xf32>
    %cst_61 = arith.constant -5.000000e+01 : f32
    %141 = vector.broadcast %cst_61 : f32 to vector<8x128xf32>
    %142 = arith.cmpf oge, %140, %141 : vector<8x128xf32>
    %143 = arith.extui %142 : vector<8x128xi1> to vector<8x128xi32>
    %144 = arith.sitofp %143 : vector<8x128xi32> to vector<8x128xf32>
    %145 = arith.index_cast %c6_i32 : i32 to index
    %c0_62 = arith.constant 0 : index
    %c0_63 = arith.constant 0 : index
    %146 = vector.load %arg5[%145, %c0_62, %c0_63] : memref<8x8x128xf32, #tpu.memory_space<vmem>>, vector<1x8x128xf32>
    %147 = vector.shape_cast %146 : vector<1x8x128xf32> to vector<8x128xf32>
    %148 = vector.shape_cast %144 : vector<8x128xf32> to vector<1x8x128xf32>
    tpu.vector_store %arg5[%145, %c0_62, %c0_63], %148 {strides = array<i32>} : memref<8x8x128xf32, #tpu.memory_space<vmem>>, vector<1x8x128xf32>,
    %cst_64 = arith.constant -6.500000e+01 : f32
    %149 = vector.broadcast %cst_64 : f32 to vector<8x128xf32>
    %150 = arith.select %142, %149, %140 : vector<8x128xi1>, vector<8x128xf32>
    %c7_i32 = arith.constant 7 : i32
    %151 = arith.index_cast %c7_i32 : i32 to index
    %c0_65 = arith.constant 0 : index
    %c0_66 = arith.constant 0 : index
    %152 = vector.load %arg3[%151, %c0_65, %c0_66] : memref<8x8x128xf32, #tpu.memory_space<vmem>>, vector<1x8x128xf32>
    %153 = vector.shape_cast %152 : vector<1x8x128xf32> to vector<8x128xf32>
    %cst_67 = arith.constant -6.500000e+01 : f32
    %154 = vector.broadcast %cst_67 : f32 to vector<8x128xf32>
    %155 = arith.subf %150, %154 : vector<8x128xf32>
    %cst_68 = arith.constant 0.000000e+00 : f32
    %156 = vector.broadcast %cst_68 : f32 to vector<8x128xf32>
    %157 = arith.subf %156, %155 : vector<8x128xf32>
    %158 = arith.addf %157, %153 : vector<8x128xf32>
    %cst_69 = arith.constant 5.000000e-02 : f32
    %159 = vector.broadcast %cst_69 : f32 to vector<8x128xf32>
    %160 = arith.mulf %158, %159 : vector<8x128xf32>
    %161 = arith.addf %150, %160 : vector<8x128xf32>
    %cst_70 = arith.constant -5.000000e+01 : f32
    %162 = vector.broadcast %cst_70 : f32 to vector<8x128xf32>
    %163 = arith.cmpf oge, %161, %162 : vector<8x128xf32>
    %164 = arith.extui %163 : vector<8x128xi1> to vector<8x128xi32>
    %165 = arith.sitofp %164 : vector<8x128xi32> to vector<8x128xf32>
    %166 = arith.index_cast %c7_i32 : i32 to index
    %c0_71 = arith.constant 0 : index
    %c0_72 = arith.constant 0 : index
    %167 = vector.load %arg5[%166, %c0_71, %c0_72] : memref<8x8x128xf32, #tpu.memory_space<vmem>>, vector<1x8x128xf32>
    %168 = vector.shape_cast %167 : vector<1x8x128xf32> to vector<8x128xf32>
    %169 = vector.shape_cast %165 : vector<8x128xf32> to vector<1x8x128xf32>
    tpu.vector_store %arg5[%166, %c0_71, %c0_72], %169 {strides = array<i32>} : memref<8x8x128xf32, #tpu.memory_space<vmem>>, vector<1x8x128xf32>,
    %cst_73 = arith.constant -6.500000e+01 : f32
    %170 = vector.broadcast %cst_73 : f32 to vector<8x128xf32>
    %171 = arith.select %163, %170, %161 : vector<8x128xi1>, vector<8x128xf32>
    %c8_i32 = arith.constant 8 : i32
    %c0_74 = arith.constant 0 : index
    %c0_75 = arith.constant 0 : index
    %172 = vector.load %arg6[%c0_74, %c0_75] : memref<8x128xf32, #tpu.memory_space<vmem>>, vector<8x128xf32>
    tpu.vector_store %arg6[%c0_74, %c0_75], %171 {strides = array<i32>} : memref<8x128xf32, #tpu.memory_space<vmem>>, vector<8x128xf32>,
    return
  }
  func.func @transform_0(%arg0: i32, %arg1: i32, %arg2: i32) -> (i32, i32, i32) {
    %c0_i32 = arith.constant 0 : i32
    return %arg2, %arg0, %arg1 : i32, i32, i32
  }
  func.func @transform_1(%arg0: i32, %arg1: i32, %arg2: i32) -> (i32, i32) {
    %c0_i32 = arith.constant 0 : i32
    return %arg0, %arg1 : i32, i32
  }
  func.func @transform_2(%arg0: i32, %arg1: i32, %arg2: i32) -> (i32, i32, i32) {
    %c0_i32 = arith.constant 0 : i32
    return %arg2, %arg0, %arg1 : i32, i32, i32
  }
  func.func @transform_3(%arg0: i32, %arg1: i32, %arg2: i32) -> (i32, i32) {
    %c0_i32 = arith.constant 0 : i32
    return %arg0, %arg1 : i32, i32
  }
}

</mosaic_0001>

<llo_original>
// kernel: lif_run.1
$region0: #{lif_run.1}
  #allocation0 [shape = 'u32[]', space=smem, size = 0x4, offset = 0x4, fixed_abs, tag = 'smem constant byte address 0x4 - core index']
  #allocation1 [shape = 'u32[144,128]{1,0:T(1,128)}', space=vmem, size = 0x12000, scoped, tag = 'internal scratch']
  %s0 = inlined_call_operand.vmem [shape: f32[8,8,128], index: 0, kind: input, shape index: {}]
  %s1 = inlined_call_operand.vmem [shape: f32[8,128], index: 1, kind: input, shape index: {}, may-alias: {1,3}]
  %s2 = inlined_call_operand.vmem [shape: f32[8,8,128], index: 2, kind: output, shape index: {0}]
  %s3 = inlined_call_operand.vmem [shape: f32[8,128], index: 3, kind: output, shape index: {1}, may-alias: {1,3}]
  %4 = xla_tuple %s2, %s3
  %s5 = sld [smem:[#allocation0]]
  $region30: #{lif_run.1} parent=0
    _
  %s7 = ssub.s32 1, %s5
  %s8 = scalar_select 0, %s7, %s5
  // Predicated region
  $region2: #{lif_run.1} parent=0 // pred_check
    _
  $region3: #{lif_run.1} parent=0 // pred_check_branch
    %10 = sbr.rel (0) target = $region5
  $region4: #{lif_run.1} parent=0 // pred_region
    _
  $region5: #{lif_run.1} parent=0 // pred_fallthru
    _
  // Predicated region
  $region6: #{lif_run.1} parent=0 // pred_check
    _
  $region7: #{lif_run.1} parent=0 // pred_check_branch
    %12 = sbr.rel (0) target = $region9
  $region8: #{lif_run.1} parent=0 // pred_region
    _
  $region9: #{lif_run.1} parent=0 // pred_fallthru
    _
  %p13 = scmp.eq.s32.totalorder 0, 0
  // Predicated region
  $region10: #{lif_run.1} parent=0 // pred_check
    %p14 = pneg %p13
  $region11: #{lif_run.1} parent=0 // pred_check_branch
    %16 = sbr.rel (%p14) target = $region13
  $region12: #{lif_run.1} parent=0 // pred_region
    %v17 = vld [vmem:[%s1] sm:$0xff]
    %18 = vst [vmem:[%s3] sm:$0xff] %v17
  $region13: #{lif_run.1} parent=0 // pred_fallthru
    _
  %v19 = vld [vmem:[%s3] sm:$0xff]
  %v20 = vld [vmem:[%s0] sm:$0xff]
  %v21 = vsub.f32 %v19, -65.0
  %v22 = vsub.f32 0.0, %v21
  %v23 = vadd.f32 %v22, %v20
  %v24 = vmul.f32 %v23, 0.05
  %v25 = vadd.f32 %v19, %v24
  %vm26 = vcmp.ge.f32.partialorder %v25, -50.0
  %v27 = vsel %vm26, 1, 0
  %v28 = vcvt.s32.f32 %v27
  %29 = vst [vmem:[%s2] sm:$0xff] %v28
  %v30 = vsel %vm26, -65.0, %v25
  %s31 = scalar_lea.vmem %s0, 8
  %v32 = vld [vmem:[%s31] sm:$0xff]
  %v33 = vsub.f32 %v30, -65.0
  %v34 = vsub.f32 0.0, %v33
  %v35 = vadd.f32 %v34, %v32
  %v36 = vmul.f32 %v35, 0.05
  %v37 = vadd.f32 %v30, %v36
  %vm38 = vcmp.ge.f32.partialorder %v37, -50.0
  %v39 = vsel %vm38, 1, 0
  %v40 = vcvt.s32.f32 %v39
  %s41 = scalar_lea.vmem %s2, 8
  %42 = vst [vmem:[%s41] sm:$0xff] %v40
  %v43 = vsel %vm38, -65.0, %v37
  %s44 = scalar_lea.vmem %s0, 16
  %v45 = vld [vmem:[%s44] sm:$0xff]
  %v46 = vsub.f32 %v43, -65.0
  %v47 = vsub.f32 0.0, %v46
  %v48 = vadd.f32 %v47, %v45
  %v49 = vmul.f32 %v48, 0.05
  %v50 = vadd.f32 %v43, %v49
  %vm51 = vcmp.ge.f32.partialorder %v50, -50.0
  %v52 = vsel %vm51, 1, 0
  %v53 = vcvt.s32.f32 %v52
  %s54 = scalar_lea.vmem %s2, 16
  %55 = vst [vmem:[%s54] sm:$0xff] %v53
  %v56 = vsel %vm51, -65.0, %v50
  %s57 = scalar_lea.vmem %s0, 24
  %v58 = vld [vmem:[%s57] sm:$0xff]
  %v59 = vsub.f32 %v56, -65.0
  %v60 = vsub.f32 0.0, %v59
  %v61 = vadd.f32 %v60, %v58
  %v62 = vmul.f32 %v61, 0.05
  %v63 = vadd.f32 %v56, %v62
  %vm64 = vcmp.ge.f32.partialorder %v63, -50.0
  %v65 = vsel %vm64, 1, 0
  %v66 = vcvt.s32.f32 %v65
  %s67 = scalar_lea.vmem %s2, 24
  %68 = vst [vmem:[%s67] sm:$0xff] %v66
  %v69 = vsel %vm64, -65.0, %v63
  %s70 = scalar_lea.vmem %s0, 32
  %v71 = vld [vmem:[%s70] sm:$0xff]
  %v72 = vsub.f32 %v69, -65.0
  %v73 = vsub.f32 0.0, %v72
  %v74 = vadd.f32 %v73, %v71
  %v75 = vmul.f32 %v74, 0.05
  %v76 = vadd.f32 %v69, %v75
  %vm77 = vcmp.ge.f32.partialorder %v76, -50.0
  %v78 = vsel %vm77, 1, 0
  %v79 = vcvt.s32.f32 %v78
  %s80 = scalar_lea.vmem %s2, 32
  %81 = vst [vmem:[%s80] sm:$0xff] %v79
  %v82 = vsel %vm77, -65.0, %v76
  %s83 = scalar_lea.vmem %s0, 40
  %v84 = vld [vmem:[%s83] sm:$0xff]
  %v85 = vsub.f32 %v82, -65.0
  %v86 = vsub.f32 0.0, %v85
  %v87 = vadd.f32 %v86, %v84
  %v88 = vmul.f32 %v87, 0.05
  %v89 = vadd.f32 %v82, %v88
  %vm90 = vcmp.ge.f32.partialorder %v89, -50.0
  %v91 = vsel %vm90, 1, 0
  %v92 = vcvt.s32.f32 %v91
  %s93 = scalar_lea.vmem %s2, 40
  %94 = vst [vmem:[%s93] sm:$0xff] %v92
  %v95 = vsel %vm90, -65.0, %v89
  %s96 = scalar_lea.vmem %s0, 48
  %v97 = vld [vmem:[%s96] sm:$0xff]
  %v98 = vsub.f32 %v95, -65.0
  %v99 = vsub.f32 0.0, %v98
  %v100 = vadd.f32 %v99, %v97
  %v101 = vmul.f32 %v100, 0.05
  %v102 = vadd.f32 %v95, %v101
  %vm103 = vcmp.ge.f32.partialorder %v102, -50.0
  %v104 = vsel %vm103, 1, 0
  %v105 = vcvt.s32.f32 %v104
  %s106 = scalar_lea.vmem %s2, 48
  %107 = vst [vmem:[%s106] sm:$0xff] %v105
  %v108 = vsel %vm103, -65.0, %v102
  %s109 = scalar_lea.vmem %s0, 56
  %v110 = vld [vmem:[%s109] sm:$0xff]
  %v111 = vsub.f32 %v108, -65.0
  %v112 = vsub.f32 0.0, %v111
  %v113 = vadd.f32 %v112, %v110
  %v114 = vmul.f32 %v113, 0.05
  %v115 = vadd.f32 %v108, %v114
  %vm116 = vcmp.ge.f32.partialorder %v115, -50.0
  %v117 = vsel %vm116, 1, 0
  %v118 = vcvt.s32.f32 %v117
  %s119 = scalar_lea.vmem %s2, 56
  %120 = vst [vmem:[%s119] sm:$0xff] %v118
  %v121 = vsel %vm116, -65.0, %v115
  %122 = vst [vmem:[%s3] sm:$0xff] %v121
  // Predicated region
  $region14: #{lif_run.1} parent=0 // pred_check
    _
  $region15: #{lif_run.1} parent=0 // pred_check_branch
    %124 = sbr.rel (0) target = $region17
  $region16: #{lif_run.1} parent=0 // pred_region
    _
  $region17: #{lif_run.1} parent=0 // pred_fallthru
    _
  // Predicated region
  $region18: #{lif_run.1} parent=0 // pred_check
    _
  $region19: #{lif_run.1} parent=0 // pred_check_branch
    %126 = sbr.rel (0) target = $region21
  $region20: #{lif_run.1} parent=0 // pred_region
    _
  $region21: #{lif_run.1} parent=0 // pred_fallthru
    _
  // Predicated region
  $region22: #{lif_run.1} parent=0 // pred_check
    _
  $region23: #{lif_run.1} parent=0 // pred_check_branch
    %128 = sbr.rel (0) target = $region25
  $region24: #{lif_run.1} parent=0 // pred_region
    _
  $region25: #{lif_run.1} parent=0 // pred_fallthru
    _
  // Predicated region
  $region26: #{lif_run.1} parent=0 // pred_check
    _
  $region27: #{lif_run.1} parent=0 // pred_check_branch
    %130 = sbr.rel (0) target = $region29
  $region28: #{lif_run.1} parent=0 // pred_region
    _
  $region29: #{lif_run.1} parent=0 // pred_fallthru
    _

</llo_original>
